<compile_context>
chip_gen: v7x
topology: tpu7x:2x2x1
jax: 0.10.0
libtpu: 0.0.40
codegen_flags: <defaults>
</compile_context>

<pallas_src>
import numpy as np
import jax
import jax.numpy as jnp
from jax.experimental import pallas as pl
from jax.experimental.pallas import tpu as pltpu


# -----------------------------------------------------------------------------
# Kernel: two lane-dense matmuls + bias + LeakyReLU(0.1).
#   x_ref   : (K1,  TM)  activation tile (bf16 by default)
#   w1_ref  : (C2,  K1)  angconv folded to a dense matrix (act dtype)
#   b1_ref  : (C2,  1)   f32
#   w23_ref : (CFF, C2)  1x1-conv + PixelShuffle + 3x3-conv folded (act dtype)
#   b23_ref : (CFF, 1)   f32
#   o_ref   : (CFF, TM)  output tile (act dtype)
# -----------------------------------------------------------------------------
def upsample_kernel(x_ref, w1_ref, b1_ref, w23_ref, b23_ref, o_ref):
    x = x_ref[...]
    # angconv (kernel==spatial, stride==an) as a dense matmul + LeakyReLU(0.1)
    h1 = jnp.dot(w1_ref[...], x, preferred_element_type=jnp.float32) + b1_ref[...]
    h1 = jnp.where(h1 > 0, h1, 0.1 * h1)            # f32 elementwise
    h1 = h1.astype(w23_ref.dtype)                   # back to act dtype for the MXU
    # upsp: 1x1 conv + PixelShuffle(f) + 3x3 pad-1 conv folded into ONE matmul
    h2 = jnp.dot(w23_ref[...], h1, preferred_element_type=jnp.float32) + b23_ref[...]
    o_ref[...] = jnp.where(h2 > 0, h2, 0.1 * h2).astype(o_ref.dtype)   # LeakyReLU(0.1)


def conv3x3_to_dense(W3, channel, f):
    """Dense matrix M (channel*f*f, channel*f*f) with out_flat = in_flat @ M,
    equivalent to Conv2d(channel, channel, 3, padding=1) on an (f x f) map."""
    cff = channel * f * f
    M = np.zeros((cff, cff), dtype=np.float32)
    for o in range(channel):
        for ci in range(channel):
            for i in range(f):
                for j in range(f):
                    for di in (-1, 0, 1):
                        for dj in (-1, 0, 1):
                            ii, jj = i + di, j + dj
                            if 0 <= ii < f and 0 <= jj < f:
                                M[ci * f * f + ii * f + jj,
                                  o * f * f + i * f + j] += W3[o, ci, di + 1, dj + 1]
    return M


def _vmem_capacity_bytes():
    """Physical VMEM per TensorCore (128 MiB v5e/v6e, 64 MiB v7x)."""
    try:
        info = pltpu.get_tpu_info()
        cap = int(getattr(info, "vmem_capacity_bytes", 0))
        if cap > 0:
            return cap
    except Exception:
        pass
    return 64 * 1024 * 1024          # conservative fallback (v7x per-TC VMEM)


def _pick_lane_tile(hw_p, bytes_per_lane, batch, act_budget_bytes):
    """128-aligned lane tile <= hw_p that fits the VMEM activation budget and
    leaves enough grid steps for megacore (v7x) + pipeline overlap."""
    cap = max(128, (act_budget_bytes // max(1, bytes_per_lane)) // 128 * 128)
    max_tm = (hw_p // 128) * 128     # never exceed the array's lane extent
    tm = max(128, min(cap, max_tm))
    # keep >= ~4 total grid steps when hw allows it (2 TCs x double buffering)
    min_steps = 4
    tiles = -(-hw_p // tm)
    if batch * tiles < min_steps:
        want = min(hw_p // 128, -(-min_steps // batch))
        if want > tiles:
            tm = max(128, min(tm, ((-(-hw_p // want) + 127) // 128) * 128))
    # prefer an even 128-aligned divisor of hw_p near tm (no ragged masked tail)
    if hw_p % 128 == 0 and hw_p % tm != 0:
        n128 = hw_p // 128
        for d in range(tm // 128, max(0, tm // 256), -1):
            if n128 % d == 0:
                tm = d * 128
                break
    return tm


def upsample_pallas(x5, params, channel, an, factor, act_dtype=jnp.bfloat16):
    W1, b1, W2, b2, W3, b3 = params
    b, n, c, h, w = x5.shape
    f = factor
    assert n == an * an and c == 2 * channel
    C2 = 2 * channel
    K1 = c * an * an
    CFF = channel * f * f
    A2 = (an * f) * (an * f)
    assert CFF % A2 == 0, "channel must be divisible by an*an (as in the torch code)"
    X = CFF // A2
    hw = h * w

    # ---------------- offline weight packing (tiny; numpy, done once) -------------
    # angconv as a (C2, K1) matrix; input-feature order is the *natural* (n, c)
    # order of x5 so the wrapper needs no input transpose.
    W1n = np.asarray(W1, np.float32)
    w1t = np.transpose(W1n.reshape(C2, C2, an * an), (0, 2, 1)).reshape(C2, K1)
    b1c = np.asarray(b1, np.float32).reshape(C2, 1)

    # Fold 1x1 conv + PixelShuffle + 3x3 conv into one (CFF, C2) matrix + bias.
    w2m = np.asarray(W2, np.float32).reshape(CFF, C2)
    M3 = conv3x3_to_dense(np.asarray(W3, np.float32), channel, f)
    w23 = M3.T @ w2m
    b23 = M3.T @ np.asarray(b2, np.float32) + np.repeat(np.asarray(b3, np.float32), f * f)

    # Permute output rows from (x, a2) to (a2, x) order so the kernel's
    # (b, CFF, hw) result reshapes straight into the module's (b, an_out^2, X, h, w).
    w23p = w23.reshape(X, A2, C2).transpose(1, 0, 2).reshape(CFF, C2)
    b23p = b23.reshape(X, A2).T.reshape(CFF, 1)

    # ---------------- lane-dense activation layout: (b, features, h*w) ------------
    xr = x5.reshape(b, K1, hw)                     # pure reshape, no transpose/copy
    if xr.dtype != act_dtype:
        xr = xr.astype(act_dtype)                  # in a full model the caller feeds bf16

    ab = jnp.dtype(act_dtype).itemsize
    # Pad ONLY tiny spatial maps up to a single 128-lane tile (lane-dense stores);
    # for hw >= 128 there is no pad/slice copy -- any ragged last tile is masked
    # by Pallas and only touches the final grid step.
    pad = (128 - hw) if hw < 128 else 0
    if pad:
        xr = jnp.pad(xr, ((0, 0), (0, 0), (0, pad)))
    hw_p = hw + pad

    # VMEM sizing: double-buffered x & out tiles + the f32 h1/h2 intermediates.
    vmem_cap = _vmem_capacity_bytes()
    vmem_limit = min(int(vmem_cap * 0.72), 96 * 1024 * 1024)   # ~46 MiB v7x, ~92 MiB v5e/v6e
    act_budget = max(4 * 1024 * 1024, vmem_limit - 2 * 1024 * 1024)
    bytes_per_lane = 2 * K1 * ab + 2 * CFF * ab + (C2 + CFF) * 4
    TM = _pick_lane_tile(hw_p, bytes_per_lane, b, act_budget)
    n_tiles = pl.cdiv(hw_p, TM)

    flops = int(2 * b * hw_p * (C2 * K1 + CFF * C2) + 4 * b * hw_p * (C2 + CFF))
    bytes_accessed = int(b * hw_p * (K1 + CFF) * ab
                         + (C2 * K1 + CFF * C2) * ab + (C2 + CFF) * 4)

    yflat = pl.pallas_call(
        upsample_kernel,
        out_shape=jax.ShapeDtypeStruct((b, CFF, hw_p), act_dtype),
        grid_spec=pltpu.PrefetchScalarGridSpec(
            num_scalar_prefetch=0,
            grid=(b, n_tiles),
            in_specs=[
                pl.BlockSpec((None, K1, TM), lambda bi, ti: (bi, 0, ti)),  # x tile
                pl.BlockSpec((C2, K1), lambda bi, ti: (0, 0)),             # w1 (resident)
                pl.BlockSpec((C2, 1), lambda bi, ti: (0, 0)),              # b1
                pl.BlockSpec((CFF, C2), lambda bi, ti: (0, 0)),            # folded w2@w3
                pl.BlockSpec((CFF, 1), lambda bi, ti: (0, 0)),             # folded bias
            ],
            out_specs=pl.BlockSpec((None, CFF, TM), lambda bi, ti: (bi, 0, ti)),
        ),
        compiler_params=pltpu.CompilerParams(
            dimension_semantics=("parallel", "parallel"),
            vmem_limit_bytes=vmem_limit,
        ),
        cost_estimate=pl.CostEstimate(
            flops=flops, transcendentals=0, bytes_accessed=bytes_accessed),
    )(
        xr,
        jnp.asarray(w1t, dtype=act_dtype),
        jnp.asarray(b1c, dtype=jnp.float32),
        jnp.asarray(w23p, dtype=act_dtype),
        jnp.asarray(b23p, dtype=jnp.float32),
    )

    if pad:
        yflat = yflat[:, :, :hw]                   # tiny (only for hw < 128)
    # free reshape to the module's output layout (b, an_out^2, X, h, w)
    return yflat.reshape(b, A2, X, h, w)


def upsample_reference(x5, params, channel, an, factor):
    """Pure-JAX reference (lax.conv) mirroring the PyTorch forward, for checking."""
    W1, b1, W2, b2, W3, b3 = params
    b, n, c, h, w = x5.shape
    f = factor
    A2 = (an * f) ** 2
    dn = ("NCHW", "OIHW", "NCHW")
    xr = x5.reshape(b, n, c, h * w).transpose(0, 3, 2, 1).reshape(b * h * w, c, an, an)
    y = jax.lax.conv_general_dilated(xr, W1, (an, an), "VALID", dimension_numbers=dn)
    y = y + b1[None, :, None, None]
    y = jnp.where(y > 0, y, 0.1 * y)
    y = jax.lax.conv_general_dilated(y, W2, (1, 1), "VALID", dimension_numbers=dn)
    y = y + b2[None, :, None, None]
    Bp = y.shape[0]
    y = y.reshape(Bp, channel, f, f)               # PixelShuffle(f) on 1x1 spatial map
    y = jax.lax.conv_general_dilated(y, W3, (1, 1), ((1, 1), (1, 1)),
                                     dimension_numbers=dn)
    y = y + b3[None, :, None, None]
    y = jnp.where(y > 0, y, 0.1 * y)
    X = channel * f * f // A2
    return y.reshape(b, h * w, X, A2).transpose(0, 3, 2, 1).reshape(b, A2, X, h, w)


if __name__ == "__main__":
    channel, an, factor = 8, 2, 2       # channel divisible by an*an (torch code requires it)
    b, h, w = 2, 4, 4
    c = 2 * channel
    n = an * an

    key = jax.random.PRNGKey(0)
    ks = jax.random.split(key, 7)
    x = jax.random.normal(ks[0], (b, n, c, h, w), jnp.float32)
    W1 = jax.random.normal(ks[1], (c, c, an, an), jnp.float32) * 0.1
    b1 = jax.random.normal(ks[2], (c,), jnp.float32) * 0.1
    W2 = jax.random.normal(ks[3], (channel * factor * factor, c, 1, 1), jnp.float32) * 0.1
    b2 = jax.random.normal(ks[4], (channel * factor * factor,), jnp.float32) * 0.1
    W3 = jax.random.normal(ks[5], (channel, channel, 3, 3), jnp.float32) * 0.1
    b3 = jax.random.normal(ks[6], (channel,), jnp.float32) * 0.1
    params = (W1, b1, W2, b2, W3, b3)

    ref = upsample_reference(x, params, channel, an, factor)
    expected_shape = (b, (an * factor) ** 2, channel // (an * an), h, w)

    # 1) Exactness of the kernel math: f32 activation path, tight tolerance.
    out32 = jax.block_until_ready(
        upsample_pallas(x, params, channel, an, factor, act_dtype=jnp.float32))
    assert out32.shape == expected_shape, out32.shape
    np.testing.assert_allclose(np.asarray(out32), np.asarray(ref), rtol=1e-4, atol=1e-4)

    # 2) Default fast path: bf16 activations (kernel is HBM-bound; ~halves traffic).
    out = jax.block_until_ready(
        upsample_pallas(x.astype(jnp.bfloat16), params, channel, an, factor))
    assert out.shape == expected_shape, out.shape
    assert out.dtype == jnp.bfloat16
    np.testing.assert_allclose(np.asarray(out.astype(jnp.float32)), np.asarray(ref),
                               rtol=3e-2, atol=3e-2)

    print("KERNEL_OK")
</pallas_src>

<mosaic_0001>
module attributes {stable_mosaic.version = 11 : i64} {
  func.func @upsample_kernel(%arg0: i32, %arg1: i32, %arg2: memref<1x64x128xf32, #tpu.memory_space<vmem>>, %arg3: memref<16x64xf32, #tpu.memory_space<vmem>>, %arg4: memref<16x1xf32, #tpu.memory_space<vmem>>, %arg5: memref<32x16xf32, #tpu.memory_space<vmem>>, %arg6: memref<32x1xf32, #tpu.memory_space<vmem>>, %arg7: memref<1x32x128xf32, #tpu.memory_space<vmem>>) attributes {dimension_semantics = [#tpu.dimension_semantics<parallel>, #tpu.dimension_semantics<parallel>], iteration_bounds = array<i64: 2, 1>, scalar_prefetch = 0 : i64, scratch_operands = 0 : i64, tpu.core_type = #tpu.core_type<tc>, window_params = [{transform_indices = @transform_0, window_bounds = array<i64: 1, 64, 128>}, {pipeline_mode = #tpu.pipeline_mode<synchronous>, transform_indices = @transform_1, window_bounds = array<i64: 16, 64>}, {pipeline_mode = #tpu.pipeline_mode<synchronous>, transform_indices = @transform_2, window_bounds = array<i64: 16, 1>}, {pipeline_mode = #tpu.pipeline_mode<synchronous>, transform_indices = @transform_3, window_bounds = array<i64: 32, 16>}, {pipeline_mode = #tpu.pipeline_mode<synchronous>, transform_indices = @transform_4, window_bounds = array<i64: 32, 1>}, {transform_indices = @transform_5, window_bounds = array<i64: 1, 32, 128>}]} {
    %c0 = arith.constant 0 : index
    %c0_0 = arith.constant 0 : index
    %c0_1 = arith.constant 0 : index
    %0 = vector.load %arg2[%c0, %c0_0, %c0_1] : memref<1x64x128xf32, #tpu.memory_space<vmem>>, vector<1x64x128xf32>
    %1 = vector.shape_cast %0 : vector<1x64x128xf32> to vector<64x128xf32>
    %c0_2 = arith.constant 0 : index
    %c0_3 = arith.constant 0 : index
    %2 = vector.load %arg3[%c0_2, %c0_3] : memref<16x64xf32, #tpu.memory_space<vmem>>, vector<16x64xf32>
    %cst = arith.constant dense<0.000000e+00> : vector<16x128xf32>
    %3 = tpu.matmul %2, %1, %cst {dimension_numbers = #tpu.dot_dimension_numbers<[1], [0], [0], [1], [0, 0, 1, 1], [], []>} : vector<16x64xf32>, vector<64x128xf32>, vector<16x128xf32> -> vector<16x128xf32>
    %c0_4 = arith.constant 0 : index
    %c0_5 = arith.constant 0 : index
    %4 = vector.load %arg4[%c0_4, %c0_5] : memref<16x1xf32, #tpu.memory_space<vmem>>, vector<16x1xf32>
    %5 = vector.broadcast %4 : vector<16x1xf32> to vector<16x128xf32>
    %6 = arith.addf %3, %5 : vector<16x128xf32>
    %cst_6 = arith.constant 0.000000e+00 : f32
    %7 = vector.broadcast %cst_6 : f32 to vector<16x128xf32>
    %8 = arith.cmpf ogt, %6, %7 : vector<16x128xf32>
    %cst_7 = arith.constant 1.000000e-01 : f32
    %9 = vector.broadcast %cst_7 : f32 to vector<16x128xf32>
    %10 = arith.mulf %9, %6 : vector<16x128xf32>
    %11 = arith.select %8, %6, %10 : vector<16x128xi1>, vector<16x128xf32>
    %c0_8 = arith.constant 0 : index
    %c0_9 = arith.constant 0 : index
    %12 = vector.load %arg5[%c0_8, %c0_9] : memref<32x16xf32, #tpu.memory_space<vmem>>, vector<32x16xf32>
    %cst_10 = arith.constant dense<0.000000e+00> : vector<32x128xf32>
    %13 = tpu.matmul %12, %11, %cst_10 {dimension_numbers = #tpu.dot_dimension_numbers<[1], [0], [0], [1], [0, 0, 1, 1], [], []>} : vector<32x16xf32>, vector<16x128xf32>, vector<32x128xf32> -> vector<32x128xf32>
    %c0_11 = arith.constant 0 : index
    %c0_12 = arith.constant 0 : index
    %14 = vector.load %arg6[%c0_11, %c0_12] : memref<32x1xf32, #tpu.memory_space<vmem>>, vector<32x1xf32>
    %15 = vector.broadcast %14 : vector<32x1xf32> to vector<32x128xf32>
    %16 = arith.addf %13, %15 : vector<32x128xf32>
    %cst_13 = arith.constant 0.000000e+00 : f32
    %17 = vector.broadcast %cst_13 : f32 to vector<32x128xf32>
    %18 = arith.cmpf ogt, %16, %17 : vector<32x128xf32>
    %cst_14 = arith.constant 1.000000e-01 : f32
    %19 = vector.broadcast %cst_14 : f32 to vector<32x128xf32>
    %20 = arith.mulf %19, %16 : vector<32x128xf32>
    %21 = arith.select %18, %16, %20 : vector<32x128xi1>, vector<32x128xf32>
    %c0_15 = arith.constant 0 : index
    %c0_16 = arith.constant 0 : index
    %c0_17 = arith.constant 0 : index
    %22 = vector.load %arg7[%c0_15, %c0_16, %c0_17] : memref<1x32x128xf32, #tpu.memory_space<vmem>>, vector<1x32x128xf32>
    %23 = vector.shape_cast %22 : vector<1x32x128xf32> to vector<32x128xf32>
    %24 = vector.shape_cast %21 : vector<32x128xf32> to vector<1x32x128xf32>
    tpu.vector_store %arg7[%c0_15, %c0_16, %c0_17], %24 {strides = array<i32>} : memref<1x32x128xf32, #tpu.memory_space<vmem>>, vector<1x32x128xf32>,
    return
  }
  func.func @transform_0(%arg0: i32, %arg1: i32) -> (i32, i32, i32) {
    %c0_i32 = arith.constant 0 : i32
    %c0_i32_0 = arith.constant 0 : i32
    return %arg0, %c0_i32, %arg1 : i32, i32, i32
  }
  func.func @transform_1(%arg0: i32, %arg1: i32) -> (i32, i32) {
    %c0_i32 = arith.constant 0 : i32
    %c0_i32_0 = arith.constant 0 : i32
    %c0_i32_1 = arith.constant 0 : i32
    return %c0_i32, %c0_i32_0 : i32, i32
  }
  func.func @transform_2(%arg0: i32, %arg1: i32) -> (i32, i32) {
    %c0_i32 = arith.constant 0 : i32
    %c0_i32_0 = arith.constant 0 : i32
    %c0_i32_1 = arith.constant 0 : i32
    return %c0_i32, %c0_i32_0 : i32, i32
  }
  func.func @transform_3(%arg0: i32, %arg1: i32) -> (i32, i32) {
    %c0_i32 = arith.constant 0 : i32
    %c0_i32_0 = arith.constant 0 : i32
    %c0_i32_1 = arith.constant 0 : i32
    return %c0_i32, %c0_i32_0 : i32, i32
  }
  func.func @transform_4(%arg0: i32, %arg1: i32) -> (i32, i32) {
    %c0_i32 = arith.constant 0 : i32
    %c0_i32_0 = arith.constant 0 : i32
    %c0_i32_1 = arith.constant 0 : i32
    return %c0_i32, %c0_i32_0 : i32, i32
  }
  func.func @transform_5(%arg0: i32, %arg1: i32) -> (i32, i32, i32) {
    %c0_i32 = arith.constant 0 : i32
    %c0_i32_0 = arith.constant 0 : i32
    return %arg0, %c0_i32, %arg1 : i32, i32, i32
  }
}

</mosaic_0001>

<llo_original>
// kernel: tpu_custom_call.1
$region0: #{tpu_custom_call.1}
  #allocation0 [shape = 'u32[]', space=smem, size = 0x4, offset = 0x4, fixed_abs, tag = 'smem constant byte address 0x4 - core index']
  #allocation1 [shape = 'u32[144,128]{1,0:T(1,128)}', space=vmem, size = 0x12000, scoped, tag = 'internal scratch']
  %s0 = inlined_call_operand.hbm [shape: f32[2,64,128], index: 0, kind: input, shape index: {}]
  %s1 = inlined_call_operand.vmem [shape: f32[16,64], index: 1, kind: input, shape index: {}]
  %s2 = inlined_call_operand.vmem [shape: f32[16,1], index: 2, kind: input, shape index: {}]
  %s3 = inlined_call_operand.vmem [shape: f32[32,16], index: 3, kind: input, shape index: {}]
  %s4 = inlined_call_operand.vmem [shape: f32[32,1], index: 4, kind: input, shape index: {}]
  %s5 = inlined_call_operand.hbm [shape: f32[2,32,128], index: 5, kind: output, shape index: {}]
  %s6 = sld [smem:[#allocation0]]
  $region57: #{tpu_custom_call.1} parent=0
    _
  %s8 = ssub.s32 1, %s6
  %s9 = scalar_select 0, %s8, %s6
  $region1: #{tpu_custom_call.1} parent=0
    #allocation2 [shape = 'u8[65536]{0}', space=vmem, size = 0x10000, scoped, tag = 'input window, operand 0']
    #allocation3 [shape = 's32[2]{0}', space=sflag, size = 0x8, scoped, tag = 'scoped memory for tpu_custom_call.1']
    #allocation4 [shape = 's32[2]{0}', space=sflag, size = 0x8, scoped, tag = 'scoped memory for tpu_custom_call.1']
    #allocation5 [shape = 'u8[32768]{0}', space=vmem, size = 0x8000, scoped, tag = 'output window, operand 0']
    %10 = vsyncpa [#allocation3], 0
    %s11 = scalar_lea.sflag [#allocation3], 1
    %12 = vsyncpa %s11, 0
    %13 = vsyncpa [#allocation4], 0
    %s14 = scalar_lea.sflag [#allocation4], 1
    %15 = vsyncpa %s14, 0
    loop: start=0, step=1, limit=4
    $region2: #{tpu_custom_call.1} parent=1 // loop_pre_header
      _
    $region3: #{tpu_custom_call.1} parent=1 // loop_header
      %s17 = sphi 0, %s21
      %p18 = scmp.ge.s32.totalorder %s17, 4
      %s24 = sphi 0, %s36
      %s25 = sphi 0, %s32
      %s26 = sphi 0, %s24
      %s27 = sphi 0, %s25
      %s28 = sphi 0, %s26
      %s29 = sphi 0, %s27
      %s41 = sphi 0, %s43
      %s44 = sphi 0, %s41
      %s45 = sphi 0, %s44
      %s61 = sphi 0, %s45
      %s65 = sphi 0, %s65
      %s67 = sphi 0, %s65
      %s68 = sphi 0, %s67
      %s82 = sphi 0, %s68
      %s86 = sphi 0, %s86
      %s88 = sphi 0, %s86
      %s89 = sphi 0, %s88
      %s103 = sphi 0, %s89
      %s107 = sphi 0, %s107
      %s109 = sphi 0, %s107
      %s110 = sphi 0, %s109
      %s124 = sphi 0, %s110
      %s128 = sphi 0, %s128
      %s130 = sphi 0, %s128
      %s131 = sphi 0, %s130
      %s145 = sphi 0, %s131
      %s153 = sphi 0, %s155
      %s156 = sphi 0, %s153
      %s157 = sphi 0, %s156
      %s173 = sphi 0, %s157
    $region4: #{tpu_custom_call.1} parent=1 // loop_header_branch
      %20 = sbr.rel (%p18) target = $region8
    $region5: #{tpu_custom_call.1} parent=1 // loop_body
      %s22 = ssub.s32 %s17, 1
      %s23 = ssub.s32 %s17, 2
      %s30 = sadd.s32 1, %s25
      %p31 = scmp.ge.s32.totalorder %s30, 1
      %s32 = scalar_select %p31, 0, %s30
      %s33 = sadd.s32 1, %s24
      %s34 = scalar_select %p31, %s33, %s24
      %p35 = scmp.ge.s32.totalorder %s34, 2
      %s36 = scalar_select %p35, 0, %s34
      %s37 = ssub.s32 %s24, %s36
      %s38 = ssub.s32 %s25, %s32
      %s39 = sor.u32 %s37, %s38
      %p40 = scmp.eq.s32.totalorder %s39, 0
      %s42 = sadd.s32 %s41, 1
      %s43 = scalar_select %p40, %s41, %s42
      %p46 = pneg %p40
      %p47 = scmp.eq.s32.totalorder %s17, 1
      %p48 = por %p46, %p47
      %p49 = scmp.ne.s32.totalorder %s41, %s44
      %p50 = scmp.eq.s32.totalorder %s17, 0
      %p51 = por %p49, %p50
      %p52 = scmp.ne.s32.totalorder %s41, %s44
      %p53 = scmp.eq.s32.totalorder %s22, 1
      %p54 = por %p52, %p53
      %p55 = scmp.ne.s32.totalorder %s44, %s45
      %p56 = scmp.eq.s32.totalorder %s22, 0
      %p57 = por %p55, %p56
      %p58 = scmp.ne.s32.totalorder %s44, %s45
      %p59 = scmp.eq.s32.totalorder %s23, 1
      %p60 = por %p58, %p59
      %p62 = scmp.ne.s32.totalorder %s45, %s61
      %p63 = scmp.eq.s32.totalorder %s23, 0
      %p64 = por %p62, %p63
      %s66 = sadd.s32 %s65, 1
      %p69 = scmp.eq.s32.totalorder %s17, 1
      %p70 = scmp.ne.s32.totalorder %s65, %s67
      %p71 = scmp.eq.s32.totalorder %s17, 0
      %p72 = por %p70, %p71
      %p73 = scmp.ne.s32.totalorder %s65, %s67
      %p74 = scmp.eq.s32.totalorder %s22, 1
      %p75 = por %p73, %p74
      %p76 = scmp.ne.s32.totalorder %s67, %s68
      %p77 = scmp.eq.s32.totalorder %s22, 0
      %p78 = por %p76, %p77
      %p79 = scmp.ne.s32.totalorder %s67, %s68
      %p80 = scmp.eq.s32.totalorder %s23, 1
      %p81 = por %p79, %p80
      %p83 = scmp.ne.s32.totalorder %s68, %s82
      %p84 = scmp.eq.s32.totalorder %s23, 0
      %p85 = por %p83, %p84
      %s87 = sadd.s32 %s86, 1
      %p90 = scmp.eq.s32.totalorder %s17, 1
      %p91 = scmp.ne.s32.totalorder %s86, %s88
      %p92 = scmp.eq.s32.totalorder %s17, 0
      %p93 = por %p91, %p92
      %p94 = scmp.ne.s32.totalorder %s86, %s88
      %p95 = scmp.eq.s32.totalorder %s22, 1
      %p96 = por %p94, %p95
      %p97 = scmp.ne.s32.totalorder %s88, %s89
      %p98 = scmp.eq.s32.totalorder %s22, 0
      %p99 = por %p97, %p98
      %p100 = scmp.ne.s32.totalorder %s88, %s89
      %p101 = scmp.eq.s32.totalorder %s23, 1
      %p102 = por %p100, %p101
      %p104 = scmp.ne.s32.totalorder %s89, %s103
      %p105 = scmp.eq.s32.totalorder %s23, 0
      %p106 = por %p104, %p105
      %s108 = sadd.s32 %s107, 1
      %p111 = scmp.eq.s32.totalorder %s17, 1
      %p112 = scmp.ne.s32.totalorder %s107, %s109
      %p113 = scmp.eq.s32.totalorder %s17, 0
      %p114 = por %p112, %p113
      %p115 = scmp.ne.s32.totalorder %s107, %s109
      %p116 = scmp.eq.s32.totalorder %s22, 1
      %p117 = por %p115, %p116
      %p118 = scmp.ne.s32.totalorder %s109, %s110
      %p119 = scmp.eq.s32.totalorder %s22, 0
      %p120 = por %p118, %p119
      %p121 = scmp.ne.s32.totalorder %s109, %s110
      %p122 = scmp.eq.s32.totalorder %s23, 1
      %p123 = por %p121, %p122
      %p125 = scmp.ne.s32.totalorder %s110, %s124
      %p126 = scmp.eq.s32.totalorder %s23, 0
      %p127 = por %p125, %p126
      %s129 = sadd.s32 %s128, 1
      %p132 = scmp.eq.s32.totalorder %s17, 1
      %p133 = scmp.ne.s32.totalorder %s128, %s130
      %p134 = scmp.eq.s32.totalorder %s17, 0
      %p135 = por %p133, %p134
      %p136 = scmp.ne.s32.totalorder %s128, %s130
      %p137 = scmp.eq.s32.totalorder %s22, 1
      %p138 = por %p136, %p137
      %p139 = scmp.ne.s32.totalorder %s130, %s131
      %p140 = scmp.eq.s32.totalorder %s22, 0
      %p141 = por %p139, %p140
      %p142 = scmp.ne.s32.totalorder %s130, %s131
      %p143 = scmp.eq.s32.totalorder %s23, 1
      %p144 = por %p142, %p143
      %p146 = scmp.ne.s32.totalorder %s131, %s145
      %p147 = scmp.eq.s32.totalorder %s23, 0
      %p148 = por %p146, %p147
      %s149 = ssub.s32 %s24, %s36
      %s150 = ssub.s32 %s25, %s32
      %s151 = sor.u32 %s149, %s150
      %p152 = scmp.eq.s32.totalorder %s151, 0
      %s154 = sadd.s32 %s153, 1
      %s155 = scalar_select %p152, %s153, %s154
      %p158 = pneg %p152
      %p159 = scmp.eq.s32.totalorder %s17, 1
      %p160 = por %p158, %p159
      %p161 = scmp.ne.s32.totalorder %s153, %s156
      %p162 = scmp.eq.s32.totalorder %s17, 0
      %p163 = por %p161, %p162
      %p164 = scmp.ne.s32.totalorder %s153, %s156
      %p165 = scmp.eq.s32.totalorder %s22, 1
      %p166 = por %p164, %p165
      %p167 = scmp.ne.s32.totalorder %s156, %s157
      %p168 = scmp.eq.s32.totalorder %s22, 0
      %p169 = por %p167, %p168
      %p170 = scmp.ne.s32.totalorder %s156, %s157
      %p171 = scmp.eq.s32.totalorder %s23, 1
      %p172 = por %p170, %p171
      %p174 = scmp.ne.s32.totalorder %s157, %s173
      %p175 = scmp.eq.s32.totalorder %s23, 0
      %p176 = por %p174, %p175
      %p177 = scmp.le.s32.totalorder 1, %s17
      %p178 = scmp.lt.s32.totalorder %s17, 3
      %p179 = pnand %p177, %p178
      %p180 = pneg %p179
      // Predicated region
      $region9: #{tpu_custom_call.1} parent=5 // pred_check
        _
      $region10: #{tpu_custom_call.1} parent=5 // pred_check_branch
        %182 = sbr.rel (%p179) target = $region12
      $region11: #{tpu_custom_call.1} parent=5 // pred_region
        %s183 = ssub.s32 %s17, 1
        // Predicated region
        $region13: #{tpu_custom_call.1} parent=11 // pred_check
          %p184 = pneg %p78
        $region14: #{tpu_custom_call.1} parent=11 // pred_check_branch
          %186 = sbr.rel (%p184) target = $region16
        $region15: #{tpu_custom_call.1} parent=11 // pred_region
          _
        $region16: #{tpu_custom_call.1} parent=11 // pred_fallthru
          _
        // Predicated region
        $region17: #{tpu_custom_call.1} parent=11 // pred_check
          %p187 = pneg %p99
        $region18: #{tpu_custom_call.1} parent=11 // pred_check_branch
          %189 = sbr.rel (%p187) target = $region20
        $region19: #{tpu_custom_call.1} parent=11 // pred_region
          _
        $region20: #{tpu_custom_call.1} parent=11 // pred_fallthru
          _
        // Predicated region
        $region21: #{tpu_custom_call.1} parent=11 // pred_check
          %p190 = pneg %p120
        $region22: #{tpu_custom_call.1} parent=11 // pred_check_branch
          %192 = sbr.rel (%p190) target = $region24
        $region23: #{tpu_custom_call.1} parent=11 // pred_region
          _
        $region24: #{tpu_custom_call.1} parent=11 // pred_fallthru
          _
        // Predicated region
        $region25: #{tpu_custom_call.1} parent=11 // pred_check
          %p193 = pneg %p141
        $region26: #{tpu_custom_call.1} parent=11 // pred_check_branch
          %195 = sbr.rel (%p193) target = $region28
        $region27: #{tpu_custom_call.1} parent=11 // pred_region
          _
        $region28: #{tpu_custom_call.1} parent=11 // pred_fallthru
          _
      $region12: #{tpu_custom_call.1} parent=5 // pred_fallthru
        _
      %p196 = scmp.lt.s32.totalorder %s17, 2
      // Predicated region
      $region29: #{tpu_custom_call.1} parent=5 // pred_check
        %p197 = pneg %p196
      $region30: #{tpu_custom_call.1} parent=5 // pred_check_branch
        %199 = sbr.rel (%p197) target = $region32
      $region31: #{tpu_custom_call.1} parent=5 // pred_region
        // Predicated region
        $region33: #{tpu_custom_call.1} parent=31 // pred_check
          %p200 = pneg %p51
        $region34: #{tpu_custom_call.1} parent=31 // pred_check_branch
          %202 = sbr.rel (%p200) target = $region36
        $region35: #{tpu_custom_call.1} parent=31 // pred_region
          %s203 = sand.u32 %s41, 1
          %s204 = scalar_lea.sflag [#allocation3], %s203
          %s205 = sand.u32 %s41, 1
          %s206 = smul.addr %s205, 64
          %s207 = scalar_lea.vmem [#allocation2], %s206
          %s209 = ssub.s32 1024, 1024
          %210 = vsyncadd %s204, %s209
          %s211 = smul.addr %s24, 8
          %s212 = sadd.s32 %s25, %s211
          %s213 = smul.addr %s212, 128
          %s214 = scalar_lea.hbm %s0, %s213
          %s215 = sshll.u32 %s207, 4
          %s216 = int_to_ptr.vmem [resolvable:$true] %s215
          %221 = dma.hbm_to_vmem [thread:$0]  %s214, 1024, %s216, %s204, 128, 128, 8
        $region36: #{tpu_custom_call.1} parent=31 // pred_fallthru
          _
      $region32: #{tpu_custom_call.1} parent=5 // pred_fallthru
        _
      %p222 = scmp.le.s32.totalorder 1, %s17
      %p223 = scmp.lt.s32.totalorder %s17, 3
      %p224 = pnand %p222, %p223
      %p225 = pneg %p224
      // Predicated region
      $region37: #{tpu_custom_call.1} parent=5 // pred_check
        _
      $region38: #{tpu_custom_call.1} parent=5 // pred_check_branch
        %227 = sbr.rel (%p224) target = $region40
      $region39: #{tpu_custom_call.1} parent=5 // pred_region
        %s228 = ssub.s32 %s17, 1
        %s229 = sand.u32 %s44, 1
        %s230 = scalar_lea.sflag [#allocation3], %s229
        %s231 = sand.u32 %s44, 1
        %s232 = smul.addr %s231, 64
        %s233 = scalar_lea.vmem [#allocation2], %s232
        // Predicated region
        $region41: #{tpu_custom_call.1} parent=39 // pred_check
          %p234 = pneg %p57
        $region42: #{tpu_custom_call.1} parent=39 // pred_check_branch
          %236 = sbr.rel (%p234) target = $region44
        $region43: #{tpu_custom_call.1} parent=39 // pred_region
          %237 = dma.done %s230, 1024
        $region44: #{tpu_custom_call.1} parent=39 // pred_fallthru
          _
        %s238 = sand.u32 %s44, 1
        %s239 = scalar_lea.sflag [#allocation3], %s238
        %s240 = sand.u32 %s44, 1
        %s241 = smul.addr %s240, 64
        %s242 = scalar_lea.vmem [#allocation2], %s241
        %p243 = pneg %p57
        %p244 = pneg %p54
        %p245 = pneg %p78
        %p246 = pneg %p75
        %p247 = pneg %p99
        %p248 = pneg %p96
        %p249 = pneg %p120
        %p250 = pneg %p117
        %p251 = pneg %p141
        %p252 = pneg %p138
        %p253 = pneg %p169
        %p254 = pneg %p166
        %s255 = sand.u32 %s156, 1
        %s256 = scalar_lea.sflag [#allocation4], %s255
        %s257 = sand.u32 %s156, 1
        %s258 = smul.addr %s257, 32
        %s259 = scalar_lea.vmem [#allocation5], %s258
        %v260 = vld [vmem:[%s233] sm:$0xff]
        %v261 = vld [vmem:[%s233 + $0x8] sm:$0xff]
        %v262 = vld [vmem:[%s233 + $0x10] sm:$0xff]
        %v263 = vld [vmem:[%s233 + $0x18] sm:$0xff]
        %v264 = vld [vmem:[%s233 + $0x20] sm:$0xff]
        %v265 = vld [vmem:[%s233 + $0x28] sm:$0xff]
        %v266 = vld [vmem:[%s233 + $0x30] sm:$0xff]
        %v267 = vld [vmem:[%s233 + $0x38] sm:$0xff]
        %v268 = vld [vmem:[%s1] sm:$0xff]
        %v269 = vld [vmem:[%s1 + $0x8] sm:$0xff]
        %v270 = vld [vmem:[%s2] sm:$0xff]
        %v271 = vld [vmem:[%s2 + $0x8] sm:$0xff]
        %273 = vset.pattern.permute.xlu0 0
        %274 = vperm.xlu0 %273, %v270
        %v275 = vpop.permute.xlu0 %274
        %278 = vset.pattern.permute.xlu0 0
        %279 = vperm.xlu0 %278, %v271
        %v280 = vpop.permute.xlu0 %279
        %vm282 = vcmask 523264
        %v284 = vsel %vm282, %v268, 0
        %v287 = vsel %vm282, %v269, 0
        %289 = vmatprep.subr.mxu0 0.0
        %290 = vmatpush1.msra.mxu0 %v260
        %291 = vmatprep.subr.mxu0 0.0
        %292 = vmatpush1.msra.mxu0 %v261
        %293 = vmatprep.subr.mxu0 0.0
        %294 = vmatpush1.msra.mxu0 %v262
        %295 = vmatprep.subr.mxu0 0.0
        %296 = vmatpush1.msra.mxu0 %v263
        %297 = vmatprep.subr.mxu0 0.0
        %298 = vmatpush1.msra.mxu0 %v264
        %299 = vmatprep.subr.mxu0 0.0
        %300 = vmatpush1.msra.mxu0 %v265
        %301 = vmatprep.subr.mxu0 0.0
        %302 = vmatpush1.msra.mxu0 %v266
        %303 = vmatprep.subr.mxu0 0.0
        %304 = vmatpush1.msra.mxu0 %v267
        %305 = vmatprep.subr.mxu0 0.0
        %306 = vmatpush1.msra.mxu0 0.0
        %307 = vmatprep.subr.mxu0 0.0
        %308 = vmatpush1.msra.mxu0 0.0
        %309 = vmatprep.subr.mxu0 0.0
        %310 = vmatpush1.msra.mxu0 0.0
        %311 = vmatprep.subr.mxu0 0.0
        %312 = vmatpush1.msra.mxu0 0.0
        %313 = vmatprep.subr.mxu0 0.0
        %314 = vmatpush1.msra.mxu0 0.0
        %315 = vmatprep.subr.mxu0 0.0
        %316 = vmatpush1.msra.mxu0 0.0
        %317 = vmatprep.subr.mxu0 0.0
        %318 = vmatpush1.msra.mxu0 0.0
        %319 = vmatprep.subr.mxu0 0.0
        %320 = vmatpush1.msra.mxu0 0.0
        %321 = vmatprep.subr.mxu0 0.0
        %322 = vmatpush1.msra.mxu0 0.0
        %323 = vmatprep.subr.mxu0 0.0
        %324 = vmatpush1.msra.mxu0 0.0
        %325 = vmatprep.subr.mxu0 0.0
        %326 = vmatpush1.msra.mxu0 0.0
        %327 = vmatprep.subr.mxu0 0.0
        %328 = vmatpush1.msra.mxu0 0.0
        %329 = vmatprep.subr.mxu0 0.0
        %330 = vmatpush1.msra.mxu0 0.0
        %331 = vmatprep.subr.mxu0 0.0
        %332 = vmatpush1.msra.mxu0 0.0
        %333 = vmatprep.subr.mxu0 0.0
        %334 = vmatpush1.msra.mxu0 0.0
        %335 = vmatprep.subr.mxu0 0.0
        %336 = vmatpush1.msra.mxu0 0.0
        %337 = vmatprep.subr.mxu0 0.0
        %338 = vmatpush1.msra.mxu0 0.0
        %339 = vmatprep.subr.mxu0 0.0
        %340 = vmatpush1.msra.mxu0 0.0
        %341 = vmatprep.subr.mxu0 0.0
        %342 = vmatpush1.msra.mxu0 0.0
        %343 = vmatprep.subr.mxu0 0.0
        %344 = vmatpush1.msra.mxu0 0.0
        %345 = vmatprep.subr.mxu0 0.0
        %346 = vmatpush1.msra.mxu0 0.0
        %347 = vmatprep.subr.mxu0 0.0
        %348 = vmatpush1.msra.mxu0 0.0
        %349 = vmatprep.subr.mxu0 0.0
        %350 = vmatpush1.msra.mxu0 0.0
        %351 = vmatprep.subr.mxu0 0.0
        %352 = vmatpush1.msra.mxu0 0.0
        %353 = vmatprep.mubr.f32.mxu0 0.0
        %354 = vmatmul.mubr.f32.gmra.mrb[0].mxu0 %v284
        %v355 = vpop.f32.mrb[0].mxu0
        %v356 = vadd.f32 %v275, %v355
        %v357 = vpop.f32.mrb[0].mxu0
        %358 = vmatprep.mubr.f32.mxu0 0.0
        %359 = vmatmul.mubr.f32.gmra.mrb[0].mxu0 %v287
        %v360 = vpop.f32.mrb[0].mxu0
        %v361 = vadd.f32 %v280, %v360
        %v362 = vpop.f32.mrb[0].mxu0
        %363 = vdwg.mxu0
        %vm364 = vcmp.gt.f32.partialorder %v356, 0.0
        %vm365 = vcmp.gt.f32.partialorder %v361, 0.0
        %v366 = vmul.f32 %v356, 0.1
        %v367 = vmul.f32 %v361, 0.1
        %v368 = vsel %vm364, %v356, %v366
        %v369 = vsel %vm365, %v361, %v367
        %v370 = vld [vmem:[%s3] sm:$0xff]
        %v371 = vld [vmem:[%s3 + $0x8] sm:$0xff]
        %v372 = vld [vmem:[%s3 + $0x10] sm:$0xff]
        %v373 = vld [vmem:[%s3 + $0x18] sm:$0xff]
        %v374 = vld [vmem:[%s4] sm:$0xff]
        %v375 = vld [vmem:[%s4 + $0x8] sm:$0xff]
        %v376 = vld [vmem:[%s4 + $0x10] sm:$0xff]
        %v377 = vld [vmem:[%s4 + $0x18] sm:$0xff]
        %379 = vset.pattern.permute.xlu0 0
        %380 = vperm.xlu0 %379, %v374
        %v381 = vpop.permute.xlu0 %380
        %384 = vset.pattern.permute.xlu0 0
        %385 = vperm.xlu0 %384, %v375
        %v386 = vpop.permute.xlu0 %385
        %389 = vset.pattern.permute.xlu0 0
        %390 = vperm.xlu0 %389, %v376
        %v391 = vpop.permute.xlu0 %390
        %394 = vset.pattern.permute.xlu0 0
        %395 = vperm.xlu0 %394, %v377
        %v396 = vpop.permute.xlu0 %395
        %vm398 = vcmask 130048
        %v400 = vsel %vm398, %v370, 0
        %v403 = vsel %vm398, %v371, 0
        %v406 = vsel %vm398, %v372, 0
        %v409 = vsel %vm398, %v373, 0
        %411 = vmatprep.subr.mxu0 0.0
        %412 = vmatpush1.msra.mxu0 %v368
        %413 = vmatprep.subr.mxu0 0.0
        %414 = vmatpush1.msra.mxu0 %v369
        %415 = vmatprep.subr.mxu0 0.0
        %416 = vmatpush1.msra.mxu0 0.0
        %417 = vmatprep.subr.mxu0 0.0
        %418 = vmatpush1.msra.mxu0 0.0
        %419 = vmatprep.subr.mxu0 0.0
        %420 = vmatpush1.msra.mxu0 0.0
        %421 = vmatprep.subr.mxu0 0.0
        %422 = vmatpush1.msra.mxu0 0.0
        %423 = vmatprep.subr.mxu0 0.0
        %424 = vmatpush1.msra.mxu0 0.0
        %425 = vmatprep.subr.mxu0 0.0
        %426 = vmatpush1.msra.mxu0 0.0
        %427 = vmatprep.subr.mxu0 0.0
        %428 = vmatpush1.msra.mxu0 0.0
        %429 = vmatprep.subr.mxu0 0.0
        %430 = vmatpush1.msra.mxu0 0.0
        %431 = vmatprep.subr.mxu0 0.0
        %432 = vmatpush1.msra.mxu0 0.0
        %433 = vmatprep.subr.mxu0 0.0
        %434 = vmatpush1.msra.mxu0 0.0
        %435 = vmatprep.subr.mxu0 0.0
        %436 = vmatpush1.msra.mxu0 0.0
        %437 = vmatprep.subr.mxu0 0.0
        %438 = vmatpush1.msra.mxu0 0.0
        %439 = vmatprep.subr.mxu0 0.0
        %440 = vmatpush1.msra.mxu0 0.0
        %441 = vmatprep.subr.mxu0 0.0
        %442 = vmatpush1.msra.mxu0 0.0
        %443 = vmatprep.subr.mxu0 0.0
        %444 = vmatpush1.msra.mxu0 0.0
        %445 = vmatprep.subr.mxu0 0.0
        %446 = vmatpush1.msra.mxu0 0.0
        %447 = vmatprep.subr.mxu0 0.0
        %448 = vmatpush1.msra.mxu0 0.0
        %449 = vmatprep.subr.mxu0 0.0
        %450 = vmatpush1.msra.mxu0 0.0
        %451 = vmatprep.subr.mxu0 0.0
        %452 = vmatpush1.msra.mxu0 0.0
        %453 = vmatprep.subr.mxu0 0.0
        %454 = vmatpush1.msra.mxu0 0.0
        %455 = vmatprep.subr.mxu0 0.0
        %456 = vmatpush1.msra.mxu0 0.0
        %457 = vmatprep.subr.mxu0 0.0
        %458 = vmatpush1.msra.mxu0 0.0
        %459 = vmatprep.subr.mxu0 0.0
        %460 = vmatpush1.msra.mxu0 0.0
        %461 = vmatprep.subr.mxu0 0.0
        %462 = vmatpush1.msra.mxu0 0.0
        %463 = vmatprep.subr.mxu0 0.0
        %464 = vmatpush1.msra.mxu0 0.0
        %465 = vmatprep.subr.mxu0 0.0
        %466 = vmatpush1.msra.mxu0 0.0
        %467 = vmatprep.subr.mxu0 0.0
        %468 = vmatpush1.msra.mxu0 0.0
        %469 = vmatprep.subr.mxu0 0.0
        %470 = vmatpush1.msra.mxu0 0.0
        %471 = vmatprep.subr.mxu0 0.0
        %472 = vmatpush1.msra.mxu0 0.0
        %473 = vmatprep.subr.mxu0 0.0
        %474 = vmatpush1.msra.mxu0 0.0
        %475 = vmatprep.mubr.f32.mxu0 0.0
        %476 = vmatmul.mubr.f32.gmra.mrb[0].mxu0 %v400
        %v477 = vpop.f32.mrb[0].mxu0
        %v478 = vadd.f32 %v381, %v477
        %v479 = vpop.f32.mrb[0].mxu0
        %480 = vmatprep.mubr.f32.mxu0 0.0
        %481 = vmatmul.mubr.f32.gmra.mrb[0].mxu0 %v403
        %v482 = vpop.f32.mrb[0].mxu0
        %v483 = vadd.f32 %v386, %v482
        %v484 = vpop.f32.mrb[0].mxu0
        %485 = vmatprep.mubr.f32.mxu0 0.0
        %486 = vmatmul.mubr.f32.gmra.mrb[0].mxu0 %v406
        %v487 = vpop.f32.mrb[0].mxu0
        %v488 = vadd.f32 %v391, %v487
        %v489 = vpop.f32.mrb[0].mxu0
        %490 = vmatprep.mubr.f32.mxu0 0.0
        %491 = vmatmul.mubr.f32.gmra.mrb[0].mxu0 %v409
        %v492 = vpop.f32.mrb[0].mxu0
        %v493 = vadd.f32 %v396, %v492
        %v494 = vpop.f32.mrb[0].mxu0
        %495 = vdwg.mxu0
        %vm496 = vcmp.gt.f32.partialorder %v478, 0.0
        %vm497 = vcmp.gt.f32.partialorder %v483, 0.0
        %vm498 = vcmp.gt.f32.partialorder %v488, 0.0
        %vm499 = vcmp.gt.f32.partialorder %v493, 0.0
        %v500 = vmul.f32 %v478, 0.1
        %v501 = vmul.f32 %v483, 0.1
        %v502 = vmul.f32 %v488, 0.1
        %v503 = vmul.f32 %v493, 0.1
        %v504 = vsel %vm496, %v478, %v500
        %v505 = vsel %vm497, %v483, %v501
        %v506 = vsel %vm498, %v488, %v502
        %v507 = vsel %vm499, %v493, %v503
        %508 = vst [vmem:[%s259] sm:$0xff] %v504
        %509 = vst [vmem:[%s259 + $0x8] sm:$0xff] %v505
        %510 = vst [vmem:[%s259 + $0x10] sm:$0xff] %v506
        %511 = vst [vmem:[%s259 + $0x18] sm:$0xff] %v507
        %s512 = sand.u32 %s156, 1
        %s513 = scalar_lea.sflag [#allocation4], %s512
        %s514 = sand.u32 %s156, 1
        %s515 = smul.addr %s514, 32
        %s516 = scalar_lea.vmem [#allocation5], %s515
        // Predicated region
        $region45: #{tpu_custom_call.1} parent=39 // pred_check
          %p517 = pneg %p166
        $region46: #{tpu_custom_call.1} parent=39 // pred_check_branch
          %519 = sbr.rel (%p517) target = $region48
        $region47: #{tpu_custom_call.1} parent=39 // pred_region
          %s521 = ssub.s32 512, 512
          %522 = vsyncadd %s513, %s521
          %s523 = smul.addr %s26, 4
          %s524 = sadd.s32 %s27, %s523
          %s525 = smul.addr %s524, 128
          %s526 = scalar_lea.hbm %s5, %s525
          %s527 = sshll.u32 %s516, 4
          %s528 = int_to_ptr.vmem [resolvable:$true] %s527
          %533 = dma.vmem_to_hbm [thread:$0]  %s528, 512, %s526, %s513, 128, 128, 8
        $region48: #{tpu_custom_call.1} parent=39 // pred_fallthru
          _
      $region40: #{tpu_custom_call.1} parent=5 // pred_fallthru
        _
      %p534 = scmp.le.s32.totalorder 2, %s17
      // Predicated region
      $region49: #{tpu_custom_call.1} parent=5 // pred_check
        %p535 = pneg %p534
      $region50: #{tpu_custom_call.1} parent=5 // pred_check_branch
        %537 = sbr.rel (%p535) target = $region52
      $region51: #{tpu_custom_call.1} parent=5 // pred_region
        %s538 = ssub.s32 %s17, 2
        // Predicated region
        $region53: #{tpu_custom_call.1} parent=51 // pred_check
          %p539 = pneg %p172
        $region54: #{tpu_custom_call.1} parent=51 // pred_check_branch
          %541 = sbr.rel (%p539) target = $region56
        $region55: #{tpu_custom_call.1} parent=51 // pred_region
          %s542 = sand.u32 %s157, 1
          %s543 = scalar_lea.sflag [#allocation4], %s542
          %s544 = sand.u32 %s157, 1
          %s545 = smul.addr %s544, 32
          %s546 = scalar_lea.vmem [#allocation5], %s545
          %547 = dma.done %s543, 512
        $region56: #{tpu_custom_call.1} parent=51 // pred_fallthru
          _
      $region52: #{tpu_custom_call.1} parent=5 // pred_fallthru
        _
    $region6: #{tpu_custom_call.1} parent=1 // loop_footer
      %s21 = sadd.s32 1, %s17
    $region7: #{tpu_custom_call.1} parent=1 // loop_footer_branch
      %16 = sbr.rel target = $region3
    $region8: #{tpu_custom_call.1} parent=1 // loop_exit
      _
    %548 = vsyncpa [#allocation3], 1
    %s549 = scalar_lea.sflag [#allocation3], 1
    %550 = vsyncpa %s549, 1
    %551 = vsyncpa [#allocation4], 1
    %s552 = scalar_lea.sflag [#allocation4], 1
    %553 = vsyncpa %s552, 1

</llo_original>
